<compile_context>
chip_gen: v5e
topology: v5e:2x2
jax: 0.10.0
libtpu: 0.0.40
codegen_flags: <defaults>
</compile_context>

<pallas_src>
import math

import jax
import jax.numpy as jnp
from jax import lax
from jax.experimental import pallas as pl
from jax.experimental.pallas import tpu as pltpu


def _gelu_exact(x):
    # Matches torch.nn.GELU() default (erf-based, not tanh approximation).
    # NOTE: lax.erf is a long VPU polynomial; jax.nn.gelu(approximate=True)
    # would offload to the EUP but is numerics-visible vs. torch parity.
    return 0.5 * x * (1.0 + lax.erf(x * (1.0 / math.sqrt(2.0))))


def _round_up(n, m):
    return ((n + m - 1) // m) * m


def st_classifier_kernel(x_ref, w1_ref, b1_ref, w2_ref, b2_ref,
                         w3_row_ref, b3_ref, o_ref):
    # Layer 1 on the MXU, f32 accumulation.
    h = jnp.dot(x_ref[...], w1_ref[...], preferred_element_type=jnp.float32)
    h = _gelu_exact(h + b1_ref[...])                       # (TILE_B, 256) f32
    # Dropout: identity (eval mode).
    # Layer 2 on the MXU (cast activations to the weight storage dtype; no-op
    # in the f32 path).
    h = jnp.dot(h.astype(w2_ref.dtype), w2_ref[...],
                preferred_element_type=jnp.float32)
    h = _gelu_exact(h + b2_ref[...])                       # (TILE_B, 64) f32
    # Dropout: identity (eval mode).
    # Final 64 -> 1 projection: VPU multiply + XLU lane reduction. An N=1
    # matmul would use 1/256th of the MXU and still pay a full result-FIFO
    # round trip in the epilogue of every tile.
    o_ref[...] = (jnp.sum(h * w3_row_ref[...], axis=-1, keepdims=True)
                  + b3_ref[...])                           # (TILE_B, 1)


def st_classifier_forward(x, params, *, tile_b=512, use_bf16=False):
    """MLP head of STClassifier as a single batch-tiled Pallas kernel.

    x: (B, in_dim) float32
    returns: (B,) float32 logits (squeeze(1) applied in the wrapper).
    """
    w1, b1, w2, b2, w3, b3 = params
    B, D = x.shape

    # Sublane granularity: 8 rows for f32 tiles, 16 for bf16-packed tiles.
    row_mult = 16 if use_bf16 else 8
    tb = min(_round_up(tile_b, row_mult), _round_up(B, row_mult))
    Bp = _round_up(B, tb)
    if Bp != B:
        # Pad once in the wrapper rather than letting Mosaic mask partial tiles.
        x = jnp.pad(x, ((0, Bp - B), (0, 0)))
    num_tiles = Bp // tb

    # w3 is stored (64, 1); present it as a lane-major (1, 64) row so the
    # in-kernel reduction needs no transpose/relayout.
    w3_row = jnp.reshape(w3, (1, w3.shape[0]))

    if use_bf16:
        # Storage dtype only: MXU accumulation, bias add and GELU stay f32.
        x = x.astype(jnp.bfloat16)
        w1 = w1.astype(jnp.bfloat16)
        w2 = w2.astype(jnp.bfloat16)

    def resident(arr):
        # Whole-array block with a constant index_map: DMA'd once, stays
        # resident in VMEM across all batch tiles.
        nd = arr.ndim
        return pl.BlockSpec(arr.shape, lambda i: (0,) * nd)

    out = pl.pallas_call(
        st_classifier_kernel,
        out_shape=jax.ShapeDtypeStruct((Bp, 1), jnp.float32),
        grid=(num_tiles,),
        in_specs=[
            pl.BlockSpec((tb, D), lambda i: (i, 0)),       # streamed x tiles
            resident(w1), resident(b1),
            resident(w2), resident(b2),
            resident(w3_row), resident(b3),
        ],
        out_specs=pl.BlockSpec((tb, 1), lambda i: (i, 0)),
        compiler_params=pltpu.CompilerParams(
            dimension_semantics=("parallel",)),            # megacore on v7x
    )(x, w1, b1, w2, b2, w3_row, b3)
    return out[:B, 0]  # squeeze(1) + drop padded rows -- glue, not hot path


def init_params(key, in_dim, hidden_layer_sizes=(256, 64)):
    """Deterministic synthetic parameters; shapes follow STClassifier.__init__."""
    dims = [in_dim, *hidden_layer_sizes, 1]
    params = []
    for i in range(len(dims) - 1):
        key, kw, kb = jax.random.split(key, 3)
        fan_in = dims[i]
        bound = 1.0 / math.sqrt(fan_in)
        # (in, out) layout so the kernel does x @ W (transpose of torch Linear).
        w = jax.random.uniform(kw, (dims[i], dims[i + 1]), jnp.float32,
                               -bound, bound)
        b = jax.random.uniform(kb, (1, dims[i + 1]), jnp.float32, -bound, bound)
        params += [w, b]
    return tuple(params)


def reference_forward(x, params):
    w1, b1, w2, b2, w3, b3 = params
    h = _gelu_exact(x @ w1 + b1)
    h = _gelu_exact(h @ w2 + b2)
    return (h @ w3 + b3)[:, 0]


if __name__ == "__main__":
    # Small shapes consistent with the module: sentence embedding dim 64,
    # concatenated pair -> in_dim = 128; hidden_layer_sizes = (256, 64).
    B = 8
    EMB = 64
    IN_DIM = EMB * 2
    HIDDEN = (256, 64)

    key = jax.random.PRNGKey(0)
    key, kx = jax.random.split(key)
    x = jax.random.normal(kx, (B, IN_DIM), jnp.float32)
    params = init_params(key, IN_DIM, HIDDEN)

    ref = reference_forward(x, params)

    # f32 path: strict parity with the torch-style reference.
    out = jax.block_until_ready(st_classifier_forward(x, params))
    assert out.shape == (B,), out.shape
    assert jnp.allclose(out, ref, atol=1e-4, rtol=1e-4), (out, ref)

    # bf16 storage path (halved x DMA, native MXU bf16 rate); looser tolerance.
    out_bf16 = jax.block_until_ready(
        st_classifier_forward(x, params, use_bf16=True))
    assert out_bf16.shape == (B,), out_bf16.shape
    assert jnp.allclose(out_bf16, ref, atol=5e-2, rtol=5e-2), (out_bf16, ref)

    print("KERNEL_OK")
</pallas_src>

<mosaic_0001>
module attributes {stable_mosaic.version = 11 : i64} {
  func.func @st_classifier_kernel(%arg0: i32, %arg1: memref<8x128xf32, #tpu.memory_space<vmem>>, %arg2: memref<128x256xf32, #tpu.memory_space<vmem>>, %arg3: memref<1x256xf32, #tpu.memory_space<vmem>>, %arg4: memref<256x64xf32, #tpu.memory_space<vmem>>, %arg5: memref<1x64xf32, #tpu.memory_space<vmem>>, %arg6: memref<1x64xf32, #tpu.memory_space<vmem>>, %arg7: memref<1x1xf32, #tpu.memory_space<vmem>>, %arg8: memref<8x1xf32, #tpu.memory_space<vmem>>) attributes {dimension_semantics = [#tpu.dimension_semantics<parallel>], iteration_bounds = array<i64: 1>, scalar_prefetch = 0 : i64, scratch_operands = 0 : i64, tpu.core_type = #tpu.core_type<tc>, window_params = [{transform_indices = @transform_0, window_bounds = array<i64: 8, 128>}, {pipeline_mode = #tpu.pipeline_mode<synchronous>, transform_indices = @transform_1, window_bounds = array<i64: 128, 256>}, {pipeline_mode = #tpu.pipeline_mode<synchronous>, transform_indices = @transform_2, window_bounds = array<i64: 1, 256>}, {pipeline_mode = #tpu.pipeline_mode<synchronous>, transform_indices = @transform_3, window_bounds = array<i64: 256, 64>}, {pipeline_mode = #tpu.pipeline_mode<synchronous>, transform_indices = @transform_4, window_bounds = array<i64: 1, 64>}, {pipeline_mode = #tpu.pipeline_mode<synchronous>, transform_indices = @transform_5, window_bounds = array<i64: 1, 64>}, {pipeline_mode = #tpu.pipeline_mode<synchronous>, transform_indices = @transform_6, window_bounds = array<i64: 1, 1>}, {transform_indices = @transform_7, window_bounds = array<i64: 8, 1>}]} {
    %c0 = arith.constant 0 : index
    %c0_0 = arith.constant 0 : index
    %0 = vector.load %arg1[%c0, %c0_0] : memref<8x128xf32, #tpu.memory_space<vmem>>, vector<8x128xf32>
    %c0_1 = arith.constant 0 : index
    %c0_2 = arith.constant 0 : index
    %1 = vector.load %arg2[%c0_1, %c0_2] : memref<128x256xf32, #tpu.memory_space<vmem>>, vector<128x256xf32>
    %cst = arith.constant dense<0.000000e+00> : vector<8x256xf32>
    %2 = tpu.matmul %0, %1, %cst {dimension_numbers = #tpu.dot_dimension_numbers<[1], [0], [0], [1], [0, 0, 1, 1], [], []>} : vector<8x128xf32>, vector<128x256xf32>, vector<8x256xf32> -> vector<8x256xf32>
    %c0_3 = arith.constant 0 : index
    %c0_4 = arith.constant 0 : index
    %3 = vector.load %arg3[%c0_3, %c0_4] : memref<1x256xf32, #tpu.memory_space<vmem>>, vector<1x256xf32>
    %4 = vector.broadcast %3 : vector<1x256xf32> to vector<8x256xf32>
    %5 = arith.addf %2, %4 : vector<8x256xf32>
    %cst_5 = arith.constant 5.000000e-01 : f32
    %6 = vector.broadcast %cst_5 : f32 to vector<8x256xf32>
    %7 = arith.mulf %6, %5 : vector<8x256xf32>
    %cst_6 = arith.constant 0.707106769 : f32
    %8 = vector.broadcast %cst_6 : f32 to vector<8x256xf32>
    %9 = arith.mulf %5, %8 : vector<8x256xf32>
    %10 = math.erf %9 : vector<8x256xf32>
    %cst_7 = arith.constant 1.000000e+00 : f32
    %11 = vector.broadcast %cst_7 : f32 to vector<8x256xf32>
    %12 = arith.addf %11, %10 : vector<8x256xf32>
    %13 = arith.mulf %7, %12 : vector<8x256xf32>
    %c0_8 = arith.constant 0 : index
    %c0_9 = arith.constant 0 : index
    %14 = vector.load %arg4[%c0_8, %c0_9] : memref<256x64xf32, #tpu.memory_space<vmem>>, vector<256x64xf32>
    %cst_10 = arith.constant dense<0.000000e+00> : vector<8x64xf32>
    %15 = tpu.matmul %13, %14, %cst_10 {dimension_numbers = #tpu.dot_dimension_numbers<[1], [0], [0], [1], [0, 0, 1, 1], [], []>} : vector<8x256xf32>, vector<256x64xf32>, vector<8x64xf32> -> vector<8x64xf32>
    %c0_11 = arith.constant 0 : index
    %c0_12 = arith.constant 0 : index
    %16 = vector.load %arg5[%c0_11, %c0_12] : memref<1x64xf32, #tpu.memory_space<vmem>>, vector<1x64xf32>
    %17 = vector.broadcast %16 : vector<1x64xf32> to vector<8x64xf32>
    %18 = arith.addf %15, %17 : vector<8x64xf32>
    %cst_13 = arith.constant 5.000000e-01 : f32
    %19 = vector.broadcast %cst_13 : f32 to vector<8x64xf32>
    %20 = arith.mulf %19, %18 : vector<8x64xf32>
    %cst_14 = arith.constant 0.707106769 : f32
    %21 = vector.broadcast %cst_14 : f32 to vector<8x64xf32>
    %22 = arith.mulf %18, %21 : vector<8x64xf32>
    %23 = math.erf %22 : vector<8x64xf32>
    %cst_15 = arith.constant 1.000000e+00 : f32
    %24 = vector.broadcast %cst_15 : f32 to vector<8x64xf32>
    %25 = arith.addf %24, %23 : vector<8x64xf32>
    %26 = arith.mulf %20, %25 : vector<8x64xf32>
    %c0_16 = arith.constant 0 : index
    %c0_17 = arith.constant 0 : index
    %27 = vector.load %arg6[%c0_16, %c0_17] : memref<1x64xf32, #tpu.memory_space<vmem>>, vector<1x64xf32>
    %28 = vector.broadcast %27 : vector<1x64xf32> to vector<8x64xf32>
    %29 = arith.mulf %26, %28 : vector<8x64xf32>
    %cst_18 = arith.constant dense<0.000000e+00> : vector<8xf32>
    %30 = vector.multi_reduction <add>, %29, %cst_18 [1] : vector<8x64xf32> to vector<8xf32>
    %31 = vector.shape_cast %30 : vector<8xf32> to vector<8x1xf32>
    %c0_19 = arith.constant 0 : index
    %c0_20 = arith.constant 0 : index
    %32 = vector.load %arg7[%c0_19, %c0_20] : memref<1x1xf32, #tpu.memory_space<vmem>>, vector<1x1xf32>
    %33 = vector.broadcast %32 : vector<1x1xf32> to vector<8x1xf32>
    %34 = arith.addf %31, %33 : vector<8x1xf32>
    %c0_21 = arith.constant 0 : index
    %c0_22 = arith.constant 0 : index
    %35 = vector.load %arg8[%c0_21, %c0_22] : memref<8x1xf32, #tpu.memory_space<vmem>>, vector<8x1xf32>
    tpu.vector_store %arg8[%c0_21, %c0_22], %34 {strides = array<i32>} : memref<8x1xf32, #tpu.memory_space<vmem>>, vector<8x1xf32>,
    return
  }
  func.func @transform_0(%arg0: i32) -> (i32, i32) {
    %c0_i32 = arith.constant 0 : i32
    %c0_i32_0 = arith.constant 0 : i32
    return %arg0, %c0_i32 : i32, i32
  }
  func.func @transform_1(%arg0: i32) -> (i32, i32) {
    %c0_i32 = arith.constant 0 : i32
    %c0_i32_0 = arith.constant 0 : i32
    %c0_i32_1 = arith.constant 0 : i32
    return %c0_i32, %c0_i32_0 : i32, i32
  }
  func.func @transform_2(%arg0: i32) -> (i32, i32) {
    %c0_i32 = arith.constant 0 : i32
    %c0_i32_0 = arith.constant 0 : i32
    %c0_i32_1 = arith.constant 0 : i32
    return %c0_i32, %c0_i32_0 : i32, i32
  }
  func.func @transform_3(%arg0: i32) -> (i32, i32) {
    %c0_i32 = arith.constant 0 : i32
    %c0_i32_0 = arith.constant 0 : i32
    %c0_i32_1 = arith.constant 0 : i32
    return %c0_i32, %c0_i32_0 : i32, i32
  }
  func.func @transform_4(%arg0: i32) -> (i32, i32) {
    %c0_i32 = arith.constant 0 : i32
    %c0_i32_0 = arith.constant 0 : i32
    %c0_i32_1 = arith.constant 0 : i32
    return %c0_i32, %c0_i32_0 : i32, i32
  }
  func.func @transform_5(%arg0: i32) -> (i32, i32) {
    %c0_i32 = arith.constant 0 : i32
    %c0_i32_0 = arith.constant 0 : i32
    %c0_i32_1 = arith.constant 0 : i32
    return %c0_i32, %c0_i32_0 : i32, i32
  }
  func.func @transform_6(%arg0: i32) -> (i32, i32) {
    %c0_i32 = arith.constant 0 : i32
    %c0_i32_0 = arith.constant 0 : i32
    %c0_i32_1 = arith.constant 0 : i32
    return %c0_i32, %c0_i32_0 : i32, i32
  }
  func.func @transform_7(%arg0: i32) -> (i32, i32) {
    %c0_i32 = arith.constant 0 : i32
    %c0_i32_0 = arith.constant 0 : i32
    return %arg0, %c0_i32 : i32, i32
  }
}

</mosaic_0001>

<llo_original>
// kernel: tpu_custom_call.1
$region0: #{tpu_custom_call.1}
  #allocation0 [shape = 'u32[]', space=smem, size = 0x4, offset = 0x4, fixed_abs, tag = 'smem constant byte address 0x4 - core index']
  #allocation1 [shape = 'u32[72,128]{1,0:T(1,128)}', space=vmem, size = 0x9000, scoped, tag = 'internal scratch']
  #allocation2 [shape = 'f32[1,1]{1,0:T(1,128)S(1)}', space=vmem, size = 0x200, scoped, tag = 'scoped memory for tpu_custom_call.1']
  %s0 = inlined_call_operand.vmem [shape: f32[8,128], index: 0, kind: input, shape index: {}]
  %s1 = inlined_call_operand.vmem [shape: f32[128,256], index: 1, kind: input, shape index: {}]
  %s2 = inlined_call_operand.vmem [shape: f32[1,256], index: 2, kind: input, shape index: {}]
  %s3 = inlined_call_operand.vmem [shape: f32[256,64], index: 3, kind: input, shape index: {}]
  %s4 = inlined_call_operand.vmem [shape: f32[1,64], index: 4, kind: input, shape index: {}]
  %s5 = inlined_call_operand.vmem [shape: f32[1,64], index: 5, kind: input, shape index: {}]
  %s6 = inlined_call_operand.<no memory space> [shape: f32[1,1], index: 6, kind: input, shape index: {}]
  %s7 = inlined_call_operand.vmem [shape: f32[8,1], index: 7, kind: output, shape index: {}]
  %s8 = sld [smem:[#allocation0]]
  $region38: #{tpu_custom_call.1} parent=0
    _
  %s10 = ssub.s32 1, %s8
  %s11 = scalar_select 0, %s10, %s8
  %v12 = vstv %s6
  %13 = vst [vmem:[#allocation2] sm:$0x1] %v12
  // Predicated region
  $region2: #{tpu_custom_call.1} parent=0 // pred_check
    _
  $region3: #{tpu_custom_call.1} parent=0 // pred_check_branch
    %15 = sbr.rel (0) target = $region5
  $region4: #{tpu_custom_call.1} parent=0 // pred_region
    _
  $region5: #{tpu_custom_call.1} parent=0 // pred_fallthru
    _
  // Predicated region
  $region6: #{tpu_custom_call.1} parent=0 // pred_check
    _
  $region7: #{tpu_custom_call.1} parent=0 // pred_check_branch
    %17 = sbr.rel (0) target = $region9
  $region8: #{tpu_custom_call.1} parent=0 // pred_region
    _
  $region9: #{tpu_custom_call.1} parent=0 // pred_fallthru
    _
  // Predicated region
  $region10: #{tpu_custom_call.1} parent=0 // pred_check
    _
  $region11: #{tpu_custom_call.1} parent=0 // pred_check_branch
    %19 = sbr.rel (0) target = $region13
  $region12: #{tpu_custom_call.1} parent=0 // pred_region
    _
  $region13: #{tpu_custom_call.1} parent=0 // pred_fallthru
    _
  // Predicated region
  $region14: #{tpu_custom_call.1} parent=0 // pred_check
    _
  $region15: #{tpu_custom_call.1} parent=0 // pred_check_branch
    %21 = sbr.rel (0) target = $region17
  $region16: #{tpu_custom_call.1} parent=0 // pred_region
    _
  $region17: #{tpu_custom_call.1} parent=0 // pred_fallthru
    _
  // Predicated region
  $region18: #{tpu_custom_call.1} parent=0 // pred_check
    _
  $region19: #{tpu_custom_call.1} parent=0 // pred_check_branch
    %23 = sbr.rel (0) target = $region21
  $region20: #{tpu_custom_call.1} parent=0 // pred_region
    _
  $region21: #{tpu_custom_call.1} parent=0 // pred_fallthru
    _
  // Predicated region
  $region22: #{tpu_custom_call.1} parent=0 // pred_check
    _
  $region23: #{tpu_custom_call.1} parent=0 // pred_check_branch
    %25 = sbr.rel (0) target = $region25
  $region24: #{tpu_custom_call.1} parent=0 // pred_region
    _
  $region25: #{tpu_custom_call.1} parent=0 // pred_fallthru
    _
  // Predicated region
  $region26: #{tpu_custom_call.1} parent=0 // pred_check
    _
  $region27: #{tpu_custom_call.1} parent=0 // pred_check_branch
    %27 = sbr.rel (0) target = $region29
  $region28: #{tpu_custom_call.1} parent=0 // pred_region
    _
  $region29: #{tpu_custom_call.1} parent=0 // pred_fallthru
    _
  %v28 = vld [vmem:[%s0] sm:$0xff]
  %v29 = vld [vmem:[%s1] sm:$0xff]
  %v30 = vld [vmem:[%s1 + $0x8] sm:$0xff]
  %v31 = vld [vmem:[%s1 + $0x10] sm:$0xff]
  %v32 = vld [vmem:[%s1 + $0x18] sm:$0xff]
  %v33 = vld [vmem:[%s1 + $0x20] sm:$0xff]
  %v34 = vld [vmem:[%s1 + $0x28] sm:$0xff]
  %v35 = vld [vmem:[%s1 + $0x30] sm:$0xff]
  %v36 = vld [vmem:[%s1 + $0x38] sm:$0xff]
  %v37 = vld [vmem:[%s1 + $0x40] sm:$0xff]
  %v38 = vld [vmem:[%s1 + $0x48] sm:$0xff]
  %v39 = vld [vmem:[%s1 + $0x50] sm:$0xff]
  %v40 = vld [vmem:[%s1 + $0x58] sm:$0xff]
  %v41 = vld [vmem:[%s1 + $0x60] sm:$0xff]
  %v42 = vld [vmem:[%s1 + $0x68] sm:$0xff]
  %v43 = vld [vmem:[%s1 + $0x70] sm:$0xff]
  %v44 = vld [vmem:[%s1 + $0x78] sm:$0xff]
  %v45 = vld [vmem:[%s1 + $0x80] sm:$0xff]
  %v46 = vld [vmem:[%s1 + $0x88] sm:$0xff]
  %v47 = vld [vmem:[%s1 + $0x90] sm:$0xff]
  %v48 = vld [vmem:[%s1 + $0x98] sm:$0xff]
  %v49 = vld [vmem:[%s1 + $0xa0] sm:$0xff]
  %v50 = vld [vmem:[%s1 + $0xa8] sm:$0xff]
  %v51 = vld [vmem:[%s1 + $0xb0] sm:$0xff]
  %v52 = vld [vmem:[%s1 + $0xb8] sm:$0xff]
  %v53 = vld [vmem:[%s1 + $0xc0] sm:$0xff]
  %v54 = vld [vmem:[%s1 + $0xc8] sm:$0xff]
  %v55 = vld [vmem:[%s1 + $0xd0] sm:$0xff]
  %v56 = vld [vmem:[%s1 + $0xd8] sm:$0xff]
  %v57 = vld [vmem:[%s1 + $0xe0] sm:$0xff]
  %v58 = vld [vmem:[%s1 + $0xe8] sm:$0xff]
  %v59 = vld [vmem:[%s1 + $0xf0] sm:$0xff]
  %v60 = vld [vmem:[%s1 + $0xf8] sm:$0xff]
  %v61 = vld [vmem:[%s2] sm:$0x3]
  %v63 = vperm.slane %v61, 0
  %v64 = vperm.slane %v61, 1
  %67 = vmatpush.msra.mxu0 %v59
  %68 = vmatpush.msra.mxu0 %v57
  %69 = vmatpush.msra.mxu0 %v55
  %70 = vmatpush.msra.mxu0 %v53
  %71 = vmatpush.msra.mxu0 %v51
  %72 = vmatpush.msra.mxu0 %v49
  %73 = vmatpush.msra.mxu0 %v47
  %74 = vmatpush.msra.mxu0 %v45
  %75 = vmatpush.msra.mxu0 %v43
  %76 = vmatpush.msra.mxu0 %v41
  %77 = vmatpush.msra.mxu0 %v39
  %78 = vmatpush.msra.mxu0 %v37
  %79 = vmatpush.msra.mxu0 %v35
  %80 = vmatpush.msra.mxu0 %v33
  %81 = vmatpush.msra.mxu0 %v31
  %82 = vmatpush.msra.mxu0 %v29
  %83 = vmatmul.f32.gmra.mxu0 %v28
  %v84 = vpop.f32.mrf.mxu0
  %v85 = vadd.f32 %v63, %v84
  %86 = vdwg.mxu0
  %87 = vmatpush.msra.mxu0 %v60
  %88 = vmatpush.msra.mxu0 %v58
  %89 = vmatpush.msra.mxu0 %v56
  %90 = vmatpush.msra.mxu0 %v54
  %91 = vmatpush.msra.mxu0 %v52
  %92 = vmatpush.msra.mxu0 %v50
  %93 = vmatpush.msra.mxu0 %v48
  %94 = vmatpush.msra.mxu0 %v46
  %95 = vmatpush.msra.mxu0 %v44
  %96 = vmatpush.msra.mxu0 %v42
  %97 = vmatpush.msra.mxu0 %v40
  %98 = vmatpush.msra.mxu0 %v38
  %99 = vmatpush.msra.mxu0 %v36
  %100 = vmatpush.msra.mxu0 %v34
  %101 = vmatpush.msra.mxu0 %v32
  %102 = vmatpush.msra.mxu0 %v30
  %103 = vmatmul.f32.gmra.mxu0 %v28
  %v104 = vpop.f32.mrf.mxu0
  %v105 = vadd.f32 %v64, %v104
  %106 = vdwg.mxu0
  %v107 = vmul.f32 %v85, 0.5
  %v108 = vmul.f32 %v105, 0.5
  %v109 = vmul.f32 %v85, 0.70710677
  %v110 = vmul.f32 %v105, 0.70710677
  %v111 = vmul.f32 %v109, %v109
  %v112 = vmin.f32 16.0, %v111
  %v113 = vmul.f32 %v112, 2.1237322e-06
  %v114 = vadd.f32 %v113, 0.00028619796
  %v115 = vmul.f32 %v112, %v114
  %v116 = vadd.f32 %v115, 0.0036580483
  %v117 = vmul.f32 %v112, %v116
  %v118 = vadd.f32 %v117, 0.05243302
  %v119 = vmul.f32 %v112, %v118
  %v120 = vadd.f32 %v119, 0.18741608
  %v121 = vmul.f32 %v112, %v120
  %v122 = vadd.f32 %v121, 1.1283791
  %v123 = vmul.f32 %v109, %v122
  %v124 = vmul.f32 %v112, 3.8918573e-05
  %v125 = vadd.f32 %v124, 0.001143296
  %v126 = vmul.f32 %v112, %v125
  %v127 = vadd.f32 %v126, 0.014752088
  %v128 = vmul.f32 %v112, %v127
  %v129 = vadd.f32 %v128, 0.112945676
  %v130 = vmul.f32 %v112, %v129
  %v131 = vadd.f32 %v130, 0.4994258
  %v132 = vmul.f32 %v112, %v131
  %v133 = vadd.f32 %v132, 1.0
  %v134 = vrcp.pop %v133
  %v135 = vmul.f32 %v133, %v134
  %v136 = vsub.f32 1.0, %v135
  %v137 = vmul.f32 %v134, %v136
  %v138 = vadd.f32 %v134, %v137
  %vm139 = vweird.f32 %v133
  %vm140 = vweird.f32 %v134
  %vm141 = vmor %vm139, %vm140
  %v142 = vsel %vm141, %v134, %v138
  %v143 = vand.u32 2147483647, %v133
  %vm144 = vcmp.eq.f32.partialorder %v143, 8.507059e+37
  %v145 = vand.u32 %v133, 2147483648
  %v146 = vor.u32 1.1754944e-38, %v145
  %v147 = vsel %vm144, %v146, %v142
  %v148 = vmul.f32 %v123, %v147
  %v149 = vmin.f32 %v148, 1.0
  %v150 = vmax.f32 %v149, -1.0
  %v151 = vmul.f32 %v110, %v110
  %v152 = vmin.f32 16.0, %v151
  %v153 = vmul.f32 %v152, 2.1237322e-06
  %v154 = vadd.f32 %v153, 0.00028619796
  %v155 = vmul.f32 %v152, %v154
  %v156 = vadd.f32 %v155, 0.0036580483
  %v157 = vmul.f32 %v152, %v156
  %v158 = vadd.f32 %v157, 0.05243302
  %v159 = vmul.f32 %v152, %v158
  %v160 = vadd.f32 %v159, 0.18741608
  %v161 = vmul.f32 %v152, %v160
  %v162 = vadd.f32 %v161, 1.1283791
  %v163 = vmul.f32 %v110, %v162
  %v164 = vmul.f32 %v152, 3.8918573e-05
  %v165 = vadd.f32 %v164, 0.001143296
  %v166 = vmul.f32 %v152, %v165
  %v167 = vadd.f32 %v166, 0.014752088
  %v168 = vmul.f32 %v152, %v167
  %v169 = vadd.f32 %v168, 0.112945676
  %v170 = vmul.f32 %v152, %v169
  %v171 = vadd.f32 %v170, 0.4994258
  %v172 = vmul.f32 %v152, %v171
  %v173 = vadd.f32 %v172, 1.0
  %v174 = vrcp.pop %v173
  %v175 = vmul.f32 %v173, %v174
  %v176 = vsub.f32 1.0, %v175
  %v177 = vmul.f32 %v174, %v176
  %v178 = vadd.f32 %v174, %v177
  %vm179 = vweird.f32 %v173
  %vm180 = vweird.f32 %v174
  %vm181 = vmor %vm179, %vm180
  %v182 = vsel %vm181, %v174, %v178
  %v183 = vand.u32 2147483647, %v173
  %vm184 = vcmp.eq.f32.partialorder %v183, 8.507059e+37
  %v185 = vand.u32 %v173, 2147483648
  %v186 = vor.u32 1.1754944e-38, %v185
  %v187 = vsel %vm184, %v186, %v182
  %v188 = vmul.f32 %v163, %v187
  %v189 = vmin.f32 %v188, 1.0
  %v190 = vmax.f32 %v189, -1.0
  %v191 = vadd.f32 %v150, 1.0
  %v192 = vadd.f32 %v190, 1.0
  %v193 = vmul.f32 %v107, %v191
  %v194 = vmul.f32 %v108, %v192
  %v195 = vld [vmem:[%s3] sm:$0xff]
  %v196 = vld [vmem:[%s3 + $0x8] sm:$0xff]
  %v197 = vld [vmem:[%s3 + $0x10] sm:$0xff]
  %v198 = vld [vmem:[%s3 + $0x18] sm:$0xff]
  %v199 = vld [vmem:[%s3 + $0x20] sm:$0xff]
  %v200 = vld [vmem:[%s3 + $0x28] sm:$0xff]
  %v201 = vld [vmem:[%s3 + $0x30] sm:$0xff]
  %v202 = vld [vmem:[%s3 + $0x38] sm:$0xff]
  %v203 = vld [vmem:[%s3 + $0x40] sm:$0xff]
  %v204 = vld [vmem:[%s3 + $0x48] sm:$0xff]
  %v205 = vld [vmem:[%s3 + $0x50] sm:$0xff]
  %v206 = vld [vmem:[%s3 + $0x58] sm:$0xff]
  %v207 = vld [vmem:[%s3 + $0x60] sm:$0xff]
  %v208 = vld [vmem:[%s3 + $0x68] sm:$0xff]
  %v209 = vld [vmem:[%s3 + $0x70] sm:$0xff]
  %v210 = vld [vmem:[%s3 + $0x78] sm:$0xff]
  %v211 = vld [vmem:[%s3 + $0x80] sm:$0xff]
  %v212 = vld [vmem:[%s3 + $0x88] sm:$0xff]
  %v213 = vld [vmem:[%s3 + $0x90] sm:$0xff]
  %v214 = vld [vmem:[%s3 + $0x98] sm:$0xff]
  %v215 = vld [vmem:[%s3 + $0xa0] sm:$0xff]
  %v216 = vld [vmem:[%s3 + $0xa8] sm:$0xff]
  %v217 = vld [vmem:[%s3 + $0xb0] sm:$0xff]
  %v218 = vld [vmem:[%s3 + $0xb8] sm:$0xff]
  %v219 = vld [vmem:[%s3 + $0xc0] sm:$0xff]
  %v220 = vld [vmem:[%s3 + $0xc8] sm:$0xff]
  %v221 = vld [vmem:[%s3 + $0xd0] sm:$0xff]
  %v222 = vld [vmem:[%s3 + $0xd8] sm:$0xff]
  %v223 = vld [vmem:[%s3 + $0xe0] sm:$0xff]
  %v224 = vld [vmem:[%s3 + $0xe8] sm:$0xff]
  %v225 = vld [vmem:[%s3 + $0xf0] sm:$0xff]
  %v226 = vld [vmem:[%s3 + $0xf8] sm:$0xff]
  %v227 = vld [vmem:[%s4] sm:$0x1]
  %v229 = vperm.slane %v227, 0
  %231 = vmatpush.msra.mxu0 %v210
  %232 = vmatpush.msra.mxu0 %v209
  %233 = vmatpush.msra.mxu0 %v208
  %234 = vmatpush.msra.mxu0 %v207
  %235 = vmatpush.msra.mxu0 %v206
  %236 = vmatpush.msra.mxu0 %v205
  %237 = vmatpush.msra.mxu0 %v204
  %238 = vmatpush.msra.mxu0 %v203
  %239 = vmatpush.msra.mxu0 %v202
  %240 = vmatpush.msra.mxu0 %v201
  %241 = vmatpush.msra.mxu0 %v200
  %242 = vmatpush.msra.mxu0 %v199
  %243 = vmatpush.msra.mxu0 %v198
  %244 = vmatpush.msra.mxu0 %v197
  %245 = vmatpush.msra.mxu0 %v196
  %246 = vmatpush.msra.mxu0 %v195
  %247 = vmatmul.f32.gmra.mxu0 %v193
  %v248 = vpop.f32.mrf.mxu0
  %v249 = vadd.f32 %v229, %v248
  %250 = vdwg.mxu0
  %251 = vmatpush.msra.mxu0 %v226
  %252 = vmatpush.msra.mxu0 %v225
  %253 = vmatpush.msra.mxu0 %v224
  %254 = vmatpush.msra.mxu0 %v223
  %255 = vmatpush.msra.mxu0 %v222
  %256 = vmatpush.msra.mxu0 %v221
  %257 = vmatpush.msra.mxu0 %v220
  %258 = vmatpush.msra.mxu0 %v219
  %259 = vmatpush.msra.mxu0 %v218
  %260 = vmatpush.msra.mxu0 %v217
  %261 = vmatpush.msra.mxu0 %v216
  %262 = vmatpush.msra.mxu0 %v215
  %263 = vmatpush.msra.mxu0 %v214
  %264 = vmatpush.msra.mxu0 %v213
  %265 = vmatpush.msra.mxu0 %v212
  %266 = vmatpush.msra.mxu0 %v211
  %267 = vmatmul.f32.gmra.mxu0 %v194
  %v268 = vpop.f32.mrf.mxu0
  %v269 = vadd.f32 %v249, %v268
  %270 = vdwg.mxu0
  %v271 = vmul.f32 %v269, 0.5
  %v272 = vmul.f32 %v269, 0.70710677
  %v273 = vmul.f32 %v272, %v272
  %v274 = vmin.f32 16.0, %v273
  %v275 = vmul.f32 %v274, 2.1237322e-06
  %v276 = vadd.f32 %v275, 0.00028619796
  %v277 = vmul.f32 %v274, %v276
  %v278 = vadd.f32 %v277, 0.0036580483
  %v279 = vmul.f32 %v274, %v278
  %v280 = vadd.f32 %v279, 0.05243302
  %v281 = vmul.f32 %v274, %v280
  %v282 = vadd.f32 %v281, 0.18741608
  %v283 = vmul.f32 %v274, %v282
  %v284 = vadd.f32 %v283, 1.1283791
  %v285 = vmul.f32 %v272, %v284
  %v286 = vmul.f32 %v274, 3.8918573e-05
  %v287 = vadd.f32 %v286, 0.001143296
  %v288 = vmul.f32 %v274, %v287
  %v289 = vadd.f32 %v288, 0.014752088
  %v290 = vmul.f32 %v274, %v289
  %v291 = vadd.f32 %v290, 0.112945676
  %v292 = vmul.f32 %v274, %v291
  %v293 = vadd.f32 %v292, 0.4994258
  %v294 = vmul.f32 %v274, %v293
  %v295 = vadd.f32 %v294, 1.0
  %v296 = vrcp.pop %v295
  %v297 = vmul.f32 %v295, %v296
  %v298 = vsub.f32 1.0, %v297
  %v299 = vmul.f32 %v296, %v298
  %v300 = vadd.f32 %v296, %v299
  %vm301 = vweird.f32 %v295
  %vm302 = vweird.f32 %v296
  %vm303 = vmor %vm301, %vm302
  %v304 = vsel %vm303, %v296, %v300
  %v305 = vand.u32 2147483647, %v295
  %vm306 = vcmp.eq.f32.partialorder %v305, 8.507059e+37
  %v307 = vand.u32 %v295, 2147483648
  %v308 = vor.u32 1.1754944e-38, %v307
  %v309 = vsel %vm306, %v308, %v304
  %v310 = vmul.f32 %v285, %v309
  %v311 = vmin.f32 %v310, 1.0
  %v312 = vmax.f32 %v311, -1.0
  %v313 = vadd.f32 %v312, 1.0
  %v314 = vmul.f32 %v271, %v313
  %v315 = vld [vmem:[%s5] sm:$0x1]
  %v317 = vperm.slane %v315, 0
  %v319 = vmul.f32 %v314, %v317
  %vm320 = vcmask 523264
  %v321 = vsel %vm320, %v319, 0.0
  %322 = vadd.xlane.f32.xlu0 %v321
  %v323 = vpop.xlane.xlu0 %322
  %v324 = vld [vmem:[#allocation2] sm:$0x1]
  %v326 = vperm.slane %v324, 0
  %v328 = vadd.f32 %v323, %v326
  %vm329 = vcmask 7168
  %330 = vst.msk [vmem:[%s7] sm:$0xff] %vm329, %v328
  // Predicated region
  $region30: #{tpu_custom_call.1} parent=0 // pred_check
    _
  $region31: #{tpu_custom_call.1} parent=0 // pred_check_branch
    %332 = sbr.rel (0) target = $region33
  $region32: #{tpu_custom_call.1} parent=0 // pred_region
    _
  $region33: #{tpu_custom_call.1} parent=0 // pred_fallthru
    _
  // Predicated region
  $region34: #{tpu_custom_call.1} parent=0 // pred_check
    _
  $region35: #{tpu_custom_call.1} parent=0 // pred_check_branch
    %334 = sbr.rel (0) target = $region37
  $region36: #{tpu_custom_call.1} parent=0 // pred_region
    _
  $region37: #{tpu_custom_call.1} parent=0 // pred_fallthru
    _

</llo_original>
